<compile_context>
chip_gen: v6e
topology: v6e:2x2x1
jax: 0.10.0
libtpu: 0.0.40
codegen_flags: <defaults>
</compile_context>

<pallas_src>
import functools

import jax
import jax.numpy as jnp
from jax.experimental import pallas as pl
from jax.experimental.pallas import tpu as pltpu


def _round_up(v, m):
    return ((v + m - 1) // m) * m


def _choose_row_tile(n, dense_bytes_per_row, sublane):
    # Keep the (single-buffer) dense input block(s) under ~12 MiB so the
    # double-buffered pipeline stays below a 32 MiB scoped-VMEM limit on every
    # generation (v5e/v6e: 128 MiB physical, v7x: 64 MiB physical).
    budget = 12 * 1024 * 1024
    max_rows = max(sublane,
                   (budget // max(dense_bytes_per_row, 1)) // sublane * sublane)
    return min(max_rows, _round_up(n, sublane), 4096)


def _vmem_params():
    return pltpu.CompilerParams(
        dimension_semantics=("parallel",),
        vmem_limit_bytes=32 * 1024 * 1024,
    )


# ---------------------------------------------------------------------------
# Primary path: integer class labels (one-hot targets rebuilt in-kernel).
# ---------------------------------------------------------------------------
def _ls_int_kernel(x_ref, lbl_ref, loss_ref, *, confidence, smoothing, n_classes):
    x = x_ref[...].astype(jnp.float32)                        # (TN, C)
    lbl = lbl_ref[...]                                        # (TN, 1) int32

    m = jnp.max(x, axis=-1, keepdims=True)                    # (TN, 1)
    lse = jnp.log(jnp.sum(jnp.exp(x - m), axis=-1, keepdims=True))

    col = jax.lax.broadcasted_iota(jnp.int32, x.shape, 1)     # (TN, C)
    base = smoothing / n_classes
    w = jnp.where(col == lbl, confidence + base, base)        # conf*onehot + s/C
    wx = jnp.sum(w * x, axis=-1, keepdims=True)               # (TN, 1)

    # one-hot target sums to 1  =>  loss = (m + lse) - sum(w * x)
    loss_ref[...] = m + lse - wx


def label_smoothing_loss(x, labels, smoothing=0.05, row_tile=None):
    """LabelSmoothing.forward (training) with integer class labels of shape (N,).

    With smoothing=0.0 this is also the eval-mode F.cross_entropy(x, labels).
    """
    assert x.ndim == 2 and labels.shape == (x.shape[0],)
    n, c = x.shape
    confidence = 1.0 - smoothing

    sublane = 16 if x.dtype == jnp.bfloat16 else 8
    if row_tile is None:
        row_tile = _choose_row_tile(n, c * x.dtype.itemsize, sublane)
    row_tile = max(sublane, _round_up(row_tile, sublane))

    n_pad = _round_up(n, row_tile)
    if n_pad != n:
        x = jnp.pad(x, ((0, n_pad - n), (0, 0)))
        labels = jnp.pad(labels, ((0, n_pad - n),))
    labels2d = labels.astype(jnp.int32).reshape(n_pad, 1)

    kernel = functools.partial(
        _ls_int_kernel,
        confidence=float(confidence),
        smoothing=float(smoothing),
        n_classes=float(c),
    )

    per_row = pl.pallas_call(
        kernel,
        out_shape=jax.ShapeDtypeStruct((n_pad, 1), jnp.float32),
        grid_spec=pltpu.PrefetchScalarGridSpec(
            num_scalar_prefetch=0,
            grid=(n_pad // row_tile,),
            in_specs=[
                pl.BlockSpec((row_tile, c), lambda i: (i, 0)),
                pl.BlockSpec((row_tile, 1), lambda i: (i, 0)),
            ],
            out_specs=pl.BlockSpec((row_tile, 1), lambda i: (i, 0)),
        ),
        compiler_params=_vmem_params(),
    )(x, labels2d)

    return jnp.mean(per_row[:n, 0])


# ---------------------------------------------------------------------------
# Fallback path: dense (soft) targets, exact for arbitrary target rows.
# ---------------------------------------------------------------------------
def _ls_soft_kernel(x_ref, t_ref, loss_ref, *, confidence, smoothing, n_classes):
    x = x_ref[...].astype(jnp.float32)                        # (TN, C)
    t = t_ref[...].astype(jnp.float32)                        # (TN, C)

    m = jnp.max(x, axis=-1, keepdims=True)
    lse = jnp.log(jnp.sum(jnp.exp(x - m), axis=-1, keepdims=True))

    s_t = jnp.sum(t, axis=-1, keepdims=True)
    wx = jnp.sum((confidence * t + smoothing / n_classes) * x,
                 axis=-1, keepdims=True)

    # conf*(-sum(t*lp)) + s*(-mean(lp)) with lp = x - m - lse, fused:
    loss_ref[...] = (confidence * s_t + smoothing) * (m + lse) - wx


def label_smoothing_loss_soft(x, target, smoothing=0.05, row_tile=None):
    """LabelSmoothing.forward (training) with dense/soft targets of shape (N, C)."""
    assert x.shape == target.shape and x.ndim == 2
    n, c = x.shape
    confidence = 1.0 - smoothing

    sublane = 16 if (x.dtype == jnp.bfloat16 and target.dtype == jnp.bfloat16) else 8
    dense_bytes = c * (x.dtype.itemsize + target.dtype.itemsize)
    if row_tile is None:
        row_tile = _choose_row_tile(n, dense_bytes, sublane)
    row_tile = max(sublane, _round_up(row_tile, sublane))

    n_pad = _round_up(n, row_tile)
    if n_pad != n:
        x = jnp.pad(x, ((0, n_pad - n), (0, 0)))
        target = jnp.pad(target, ((0, n_pad - n), (0, 0)))

    kernel = functools.partial(
        _ls_soft_kernel,
        confidence=float(confidence),
        smoothing=float(smoothing),
        n_classes=float(c),
    )

    per_row = pl.pallas_call(
        kernel,
        out_shape=jax.ShapeDtypeStruct((n_pad, 1), jnp.float32),
        grid_spec=pltpu.PrefetchScalarGridSpec(
            num_scalar_prefetch=0,
            grid=(n_pad // row_tile,),
            in_specs=[
                pl.BlockSpec((row_tile, c), lambda i: (i, 0)),
                pl.BlockSpec((row_tile, c), lambda i: (i, 0)),
            ],
            out_specs=pl.BlockSpec((row_tile, 1), lambda i: (i, 0)),
        ),
        compiler_params=_vmem_params(),
    )(x, target)

    return jnp.mean(per_row[:n, 0])


# ---------------------------------------------------------------------------
# Reference + test
# ---------------------------------------------------------------------------
def _reference(x, target, smoothing=0.05):
    x = x.astype(jnp.float32)
    target = target.astype(jnp.float32)
    logprobs = jax.nn.log_softmax(x, axis=-1)
    nll = jnp.sum(-logprobs * target, axis=-1)
    smooth = -jnp.mean(logprobs, axis=-1)
    loss = (1.0 - smoothing) * nll + smoothing * smooth
    return jnp.mean(loss)


if __name__ == "__main__":
    key = jax.random.PRNGKey(0)
    kx, kt, kx2, kt2 = jax.random.split(key, 4)

    # Case 1: f32 logits, one-hot targets -> integer-label fast path + soft path.
    N, C = 8, 32
    x = jax.random.normal(kx, (N, C), dtype=jnp.float32)
    labels = jax.random.randint(kt, (N,), 0, C)
    target = jax.nn.one_hot(labels, C, dtype=jnp.float32)

    out_int = jax.block_until_ready(label_smoothing_loss(x, labels, smoothing=0.05))
    out_soft = jax.block_until_ready(label_smoothing_loss_soft(x, target, smoothing=0.05))
    ref = _reference(x, target, smoothing=0.05)
    assert jnp.allclose(out_int, ref, rtol=1e-5, atol=1e-5), (out_int, ref)
    assert jnp.allclose(out_soft, ref, rtol=1e-5, atol=1e-5), (out_soft, ref)

    # Case 2: ragged row count (exercises padding/masked mean) with bf16 logits.
    N2, C2 = 12, 40
    x2 = jax.random.normal(kx2, (N2, C2), dtype=jnp.float32).astype(jnp.bfloat16)
    labels2 = jax.random.randint(kt2, (N2,), 0, C2)
    target2 = jax.nn.one_hot(labels2, C2, dtype=jnp.float32)
    out2 = jax.block_until_ready(label_smoothing_loss(x2, labels2, smoothing=0.05))
    ref2 = _reference(x2.astype(jnp.float32), target2, smoothing=0.05)
    assert jnp.allclose(out2, ref2, rtol=1e-4, atol=1e-4), (out2, ref2)

    print("KERNEL_OK")
</pallas_src>

<mosaic_0001>
module attributes {stable_mosaic.version = 11 : i64} {
  func.func @_ls_int_kernel(%arg0: i32, %arg1: memref<8x32xf32, #tpu.memory_space<vmem>>, %arg2: memref<8x1xi32, #tpu.memory_space<vmem>>, %arg3: memref<8x1xf32, #tpu.memory_space<vmem>>) attributes {dimension_semantics = [#tpu.dimension_semantics<parallel>], iteration_bounds = array<i64: 1>, scalar_prefetch = 0 : i64, scratch_operands = 0 : i64, tpu.core_type = #tpu.core_type<tc>, window_params = [{transform_indices = @transform_0, window_bounds = array<i64: 8, 32>}, {transform_indices = @transform_1, window_bounds = array<i64: 8, 1>}, {transform_indices = @transform_2, window_bounds = array<i64: 8, 1>}]} {
    %c0 = arith.constant 0 : index
    %c0_0 = arith.constant 0 : index
    %0 = vector.load %arg1[%c0, %c0_0] : memref<8x32xf32, #tpu.memory_space<vmem>>, vector<8x32xf32>
    %c0_1 = arith.constant 0 : index
    %c0_2 = arith.constant 0 : index
    %1 = vector.load %arg2[%c0_1, %c0_2] : memref<8x1xi32, #tpu.memory_space<vmem>>, vector<8x1xi32>
    %cst = arith.constant dense<0xFF800000> : vector<8xf32>
    %2 = vector.multi_reduction <maximumf>, %0, %cst [1] : vector<8x32xf32> to vector<8xf32>
    %3 = vector.shape_cast %2 : vector<8xf32> to vector<8x1xf32>
    %4 = vector.broadcast %3 : vector<8x1xf32> to vector<8x32xf32>
    %5 = arith.subf %0, %4 : vector<8x32xf32>
    %6 = math.exp %5 : vector<8x32xf32>
    %cst_3 = arith.constant dense<0.000000e+00> : vector<8xf32>
    %7 = vector.multi_reduction <add>, %6, %cst_3 [1] : vector<8x32xf32> to vector<8xf32>
    %8 = vector.shape_cast %7 : vector<8xf32> to vector<8x1xf32>
    %9 = math.log %8 : vector<8x1xf32>
    %10 = tpu.iota {dimensions = array<i32: 1>} : vector<8x32xi32>
    %11 = vector.broadcast %1 : vector<8x1xi32> to vector<8x32xi32>
    %12 = arith.cmpi eq, %10, %11 : vector<8x32xi32>
    %cst_4 = arith.constant 0.951562523 : f32
    %cst_5 = arith.constant 1.562500e-03 : f32
    %13 = vector.broadcast %cst_4 : f32 to vector<8x32xf32>
    %14 = vector.broadcast %cst_5 : f32 to vector<8x32xf32>
    %15 = arith.select %12, %13, %14 : vector<8x32xi1>, vector<8x32xf32>
    %16 = arith.mulf %15, %0 : vector<8x32xf32>
    %cst_6 = arith.constant dense<0.000000e+00> : vector<8xf32>
    %17 = vector.multi_reduction <add>, %16, %cst_6 [1] : vector<8x32xf32> to vector<8xf32>
    %18 = vector.shape_cast %17 : vector<8xf32> to vector<8x1xf32>
    %19 = arith.addf %3, %9 : vector<8x1xf32>
    %20 = arith.subf %19, %18 : vector<8x1xf32>
    %c0_7 = arith.constant 0 : index
    %c0_8 = arith.constant 0 : index
    %21 = vector.load %arg3[%c0_7, %c0_8] : memref<8x1xf32, #tpu.memory_space<vmem>>, vector<8x1xf32>
    tpu.vector_store %arg3[%c0_7, %c0_8], %20 {strides = array<i32>} : memref<8x1xf32, #tpu.memory_space<vmem>>, vector<8x1xf32>,
    return
  }
  func.func @transform_0(%arg0: i32) -> (i32, i32) {
    %c0_i32 = arith.constant 0 : i32
    %c0_i32_0 = arith.constant 0 : i32
    return %arg0, %c0_i32 : i32, i32
  }
  func.func @transform_1(%arg0: i32) -> (i32, i32) {
    %c0_i32 = arith.constant 0 : i32
    %c0_i32_0 = arith.constant 0 : i32
    return %arg0, %c0_i32 : i32, i32
  }
  func.func @transform_2(%arg0: i32) -> (i32, i32) {
    %c0_i32 = arith.constant 0 : i32
    %c0_i32_0 = arith.constant 0 : i32
    return %arg0, %c0_i32 : i32, i32
  }
}

</mosaic_0001>

<llo_original>
// kernel: tpu_custom_call.1
$region0: #{tpu_custom_call.1}
  #allocation0 [shape = 'u32[]', space=smem, size = 0x4, offset = 0x4, fixed_abs, tag = 'smem constant byte address 0x4 - core index']
  #allocation1 [shape = 'u32[144,128]{1,0:T(1,128)}', space=vmem, size = 0x12000, scoped, tag = 'internal scratch']
  %s0 = inlined_call_operand.vmem [shape: f32[8,32], index: 0, kind: input, shape index: {}]
  %s1 = inlined_call_operand.vmem [shape: s32[8,1], index: 1, kind: input, shape index: {}]
  %s2 = inlined_call_operand.vmem [shape: f32[8,1], index: 2, kind: output, shape index: {}]
  %s3 = sld [smem:[#allocation0]]
  $region18: #{tpu_custom_call.1} parent=0
    _
  %s5 = ssub.s32 1, %s3
  %s6 = scalar_select 0, %s5, %s3
  // Predicated region
  $region2: #{tpu_custom_call.1} parent=0 // pred_check
    _
  $region3: #{tpu_custom_call.1} parent=0 // pred_check_branch
    %8 = sbr.rel (0) target = $region5
  $region4: #{tpu_custom_call.1} parent=0 // pred_region
    _
  $region5: #{tpu_custom_call.1} parent=0 // pred_fallthru
    _
  // Predicated region
  $region6: #{tpu_custom_call.1} parent=0 // pred_check
    _
  $region7: #{tpu_custom_call.1} parent=0 // pred_check_branch
    %10 = sbr.rel (0) target = $region9
  $region8: #{tpu_custom_call.1} parent=0 // pred_region
    _
  $region9: #{tpu_custom_call.1} parent=0 // pred_fallthru
    _
  %v11 = vld [vmem:[%s0] sm:$0xff]
  %v12 = vld [vmem:[%s1] sm:$0xff]
  %vm13 = vcmask 261120
  %v14 = vsel %vm13, %v11, -inf
  %15 = vmax.xlane.f32.xlu0 %v14
  %v16 = vpop.xlane.xlu0 %15
  %v17 = vsub.f32 %v11, %v16
  %v18 = vmul.f32 %v17, 1.442695
  %v19 = vpow.pop %v18
  %v20 = vsel %vm13, %v19, 0.0
  %21 = vadd.xlane.f32.xlu0 %v20
  %v22 = vpop.xlane.xlu0 %21
  %v23 = vlog2.pop %v22
  %v24 = vmul.f32 %v23, 0.6931472
  %v25 = vlaneseq
  %v26 = vand.u32 %v25, 127
  %27 = vset.pattern.permute.xlu0 0
  %28 = vperm.xlu0 %27, %v12
  %v29 = vpop.permute.xlu0 %28
  %vm30 = vcmp.eq.s32.totalorder %v26, %v29
  %v31 = vsel %vm30, 0.9515625, 0.0015625
  %v32 = vmul.f32 %v31, %v11
  %v33 = vsel %vm13, %v32, 0.0
  %34 = vadd.xlane.f32.xlu0 %v33
  %v35 = vpop.xlane.xlu0 %34
  %v36 = vadd.f32 %v16, %v24
  %v37 = vsub.f32 %v36, %v35
  %vm38 = vcmask 7168
  %39 = vst.msk [vmem:[%s2] sm:$0xff] %vm38, %v37
  // Predicated region
  $region10: #{tpu_custom_call.1} parent=0 // pred_check
    _
  $region11: #{tpu_custom_call.1} parent=0 // pred_check_branch
    %41 = sbr.rel (0) target = $region13
  $region12: #{tpu_custom_call.1} parent=0 // pred_region
    _
  $region13: #{tpu_custom_call.1} parent=0 // pred_fallthru
    _
  // Predicated region
  $region14: #{tpu_custom_call.1} parent=0 // pred_check
    _
  $region15: #{tpu_custom_call.1} parent=0 // pred_check_branch
    %43 = sbr.rel (0) target = $region17
  $region16: #{tpu_custom_call.1} parent=0 // pred_region
    _
  $region17: #{tpu_custom_call.1} parent=0 // pred_fallthru
    _

</llo_original>
